<compile_context>
chip_gen: v5e
topology: v5e:2x2
jax: 0.10.0
libtpu: 0.0.40
codegen_flags: <defaults>
</compile_context>

<pallas_src>
import jax
import jax.numpy as jnp
from jax.experimental import pallas as pl
from jax.experimental.pallas import tpu as pltpu


# ---------------------------------------------------------------------------
# Kernel bodies
# ---------------------------------------------------------------------------

def _compute_dtype_for(dtype):
    # bf16 VPU is native on v6e/v7x: multiply in bf16, accumulate reduce in f32.
    return jnp.bfloat16 if dtype == jnp.bfloat16 else jnp.float32


def _survival_kernel_small(x_ref, w_ref, b_ref, out_ref):
    """Single-shot path (tiny B).

    x_ref:   [B, C]  VMEM
    w_ref:   [2, C]  VMEM  (row 0 = risk_fc.weight, row 1 = time_fc.weight)
    b_ref:   [2]     SMEM  (f32 scalars: risk bias, time bias)
    out_ref: [B, 2]  VMEM  (col 0 = risk_score, col 1 = survival_time)
    """
    cd = _compute_dtype_for(x_ref.dtype)
    x = x_ref[...].astype(cd)                       # [B, C]
    w = w_ref[...].astype(cd)                       # [2, C]

    # VPU elementwise mul + XLU lane-reduce with f32 accumulation; MXU unused.
    risk = jnp.sum((x * w[0:1, :]).astype(jnp.float32), axis=-1, keepdims=True) + b_ref[0]
    time = jnp.sum((x * w[1:2, :]).astype(jnp.float32), axis=-1, keepdims=True) + b_ref[1]
    time = jnp.maximum(time, 0.0) + 1e-6            # relu + eps

    # One lane-contiguous [B, 2] store (single writeback DMA).
    out_ref[...] = jnp.concatenate([risk, time], axis=-1).astype(out_ref.dtype)


def _survival_kernel_tiled(x_ref, w_ref, b_ref, out_ref):
    """Tiled path (large B), lane-dense head-major output.

    x_ref:   [TB, C] VMEM tile
    w_ref:   [2, C]  VMEM
    b_ref:   [2]     SMEM
    out_ref: [2, TB] VMEM tile (row 0 = risk_score, row 1 = survival_time)
    """
    cd = _compute_dtype_for(x_ref.dtype)
    x = x_ref[...].astype(cd)                       # [TB, C]
    w = w_ref[...].astype(cd)                       # [2, C]

    # Per-head lane reductions, relaid out into row form [1, TB] so the output
    # block is lane-dense (unmasked vst) instead of a 2-of-128-lane masked store.
    risk = jnp.sum((x * w[0:1, :]).astype(jnp.float32), axis=-1)[None, :] + b_ref[0]
    time = jnp.sum((x * w[1:2, :]).astype(jnp.float32), axis=-1)[None, :] + b_ref[1]
    time = jnp.maximum(time, 0.0) + 1e-6

    out_ref[...] = jnp.concatenate([risk, time], axis=0).astype(out_ref.dtype)


# ---------------------------------------------------------------------------
# Wrapper
# ---------------------------------------------------------------------------

def survival_classifier(x, w, b, *, block_b=512):
    """Forward pass of SurvivalClassifier.

    x: [B, C] features.
    w: [2, C] pre-fused weights (row 0 = risk_fc, row 1 = time_fc, PyTorch layout).
    b: [2]    pre-fused biases (float32).
    Returns {'risk_score': [B, 1] f32, 'survival_time': [B, 1] f32}.
    """
    B, C = x.shape
    assert w.shape == (2, C)
    if b.dtype != jnp.float32:          # trace-time only; callers should pass f32
        b = b.astype(jnp.float32)

    use_tiled = (B >= block_b) and (B % block_b == 0)

    if not use_tiled:
        # Tiny-B standalone path: one block, no grid, [B, 2] output.
        full = lambda shape: pl.BlockSpec(shape, lambda: tuple(0 for _ in shape))
        out = pl.pallas_call(
            _survival_kernel_small,
            out_shape=jax.ShapeDtypeStruct((B, 2), jnp.float32),
            grid=(),
            in_specs=[
                full((B, C)),                                       # x -> VMEM
                full((2, C)),                                       # w -> VMEM
                pl.BlockSpec(memory_space=pltpu.MemorySpace.SMEM),  # b -> SMEM
            ],
            out_specs=full((B, 2)),
        )(x, w, b)
        return {"risk_score": out[:, 0:1], "survival_time": out[:, 1:2]}

    # Large-B path: 1-D grid over B with double-buffered (TB, C) tiles and a
    # lane-dense [2, B] output.  TB=512 f32 tiles (double-buffered) stay far
    # below the 32 MiB scoped-VMEM default, including on 64 MiB-VMEM v7x.
    nb = B // block_b
    out = pl.pallas_call(
        _survival_kernel_tiled,
        out_shape=jax.ShapeDtypeStruct((2, B), jnp.float32),
        grid=(nb,),
        in_specs=[
            pl.BlockSpec((block_b, C), lambda i: (i, 0)),           # x tile
            pl.BlockSpec((2, C), lambda i: (0, 0)),                 # w (resident)
            pl.BlockSpec(memory_space=pltpu.MemorySpace.SMEM),      # b scalars
        ],
        out_specs=pl.BlockSpec((2, block_b), lambda i: (0, i)),
        compiler_params=pltpu.CompilerParams(
            dimension_semantics=("parallel",),   # shards B across v7x's 2 TCs
        ),
    )(x, w, b)
    return {"risk_score": out[0].reshape(B, 1), "survival_time": out[1].reshape(B, 1)}


# ---------------------------------------------------------------------------
# Parameter handling (one-time, NOT per call)
# ---------------------------------------------------------------------------

def fuse_params(w_risk, b_risk, w_time, b_time):
    """One-time conversion from PyTorch per-head layout (weight [1,C], bias [1])
    to the fused layout consumed by the kernel.  Call at init / checkpoint-load
    time, never in the per-step forward path."""
    w = jnp.concatenate([w_risk.reshape(1, -1), w_time.reshape(1, -1)], axis=0)   # [2, C]
    b = jnp.concatenate([b_risk.reshape(1), b_time.reshape(1)],
                        axis=0).astype(jnp.float32)                               # [2]
    return w, b


def init_params(key, n_channels, dtype=jnp.float32):
    """nn.Linear default init (U(+/- 1/sqrt(fan_in))), returned pre-fused."""
    k1, k2, k3, k4 = jax.random.split(key, 4)
    bound = 1.0 / (float(n_channels) ** 0.5)
    w_risk = jax.random.uniform(k1, (1, n_channels), dtype, -bound, bound)
    b_risk = jax.random.uniform(k2, (1,), dtype, -bound, bound)
    w_time = jax.random.uniform(k3, (1, n_channels), dtype, -bound, bound)
    b_time = jax.random.uniform(k4, (1,), dtype, -bound, bound)
    return fuse_params(w_risk, b_risk, w_time, b_time)


# ---------------------------------------------------------------------------
# Self-test
# ---------------------------------------------------------------------------

if __name__ == "__main__":
    key = jax.random.PRNGKey(0)
    kx1, kx2, kp = jax.random.split(key, 3)

    C = 32
    w, b = init_params(kp, C)

    def reference(x, w, b):
        xf = x.astype(jnp.float32)
        wf = w.astype(jnp.float32)
        risk = xf @ wf[0][:, None] + b[0]                                # [B, 1]
        time = jnp.maximum(xf @ wf[1][:, None] + b[1], 0.0) + 1e-6       # [B, 1]
        return risk, time

    fn = jax.jit(survival_classifier)

    # 1) Tiny bag-level batch (typical DTFD survival-head use) -> single-shot path.
    B1 = 8
    x1 = jax.random.normal(kx1, (B1, C), dtype=jnp.float32)
    out1 = fn(x1, w, b)
    jax.block_until_ready(out1)
    r1, t1 = reference(x1, w, b)
    assert out1["risk_score"].shape == (B1, 1) and out1["risk_score"].dtype == jnp.float32
    assert out1["survival_time"].shape == (B1, 1) and out1["survival_time"].dtype == jnp.float32
    assert jnp.allclose(out1["risk_score"], r1, atol=1e-4)
    assert jnp.allclose(out1["survival_time"], t1, atol=1e-4)

    # 2) Larger instance-level batch -> tiled / lane-dense / parallel-grid path.
    B2 = 1024
    x2 = jax.random.normal(kx2, (B2, C), dtype=jnp.float32)
    out2 = fn(x2, w, b)
    jax.block_until_ready(out2)
    r2, t2 = reference(x2, w, b)
    assert out2["risk_score"].shape == (B2, 1) and out2["risk_score"].dtype == jnp.float32
    assert out2["survival_time"].shape == (B2, 1) and out2["survival_time"].dtype == jnp.float32
    assert jnp.allclose(out2["risk_score"], r2, atol=1e-4)
    assert jnp.allclose(out2["survival_time"], t2, atol=1e-4)

    print("KERNEL_OK")
</pallas_src>

<mosaic_0001>
module attributes {stable_mosaic.version = 11 : i64} {
  func.func @_survival_kernel_small(%arg0: memref<8x32xf32, #tpu.memory_space<vmem>>, %arg1: memref<2x32xf32, #tpu.memory_space<vmem>>, %arg2: memref<2xf32, #tpu.memory_space<smem>>, %arg3: memref<8x2xf32, #tpu.memory_space<vmem>>) attributes {dimension_semantics = [], scalar_prefetch = 0 : i64, scratch_operands = 0 : i64, tpu.core_type = #tpu.core_type<tc>} {
    %c0 = arith.constant 0 : index
    %c0_0 = arith.constant 0 : index
    %0 = vector.load %arg0[%c0, %c0_0] : memref<8x32xf32, #tpu.memory_space<vmem>>, vector<8x32xf32>
    %c0_1 = arith.constant 0 : index
    %c0_2 = arith.constant 0 : index
    %1 = vector.load %arg1[%c0_1, %c0_2] : memref<2x32xf32, #tpu.memory_space<vmem>>, vector<2x32xf32>
    %2 = vector.extract_strided_slice %1 {offsets = [0, 0], sizes = [1, 32], strides = [1, 1]} : vector<2x32xf32> to vector<1x32xf32>
    %3 = vector.broadcast %2 : vector<1x32xf32> to vector<8x32xf32>
    %4 = arith.mulf %0, %3 : vector<8x32xf32>
    %cst = arith.constant dense<0.000000e+00> : vector<8xf32>
    %5 = vector.multi_reduction <add>, %4, %cst [1] : vector<8x32xf32> to vector<8xf32>
    %6 = vector.shape_cast %5 : vector<8xf32> to vector<8x1xf32>
    %c0_3 = arith.constant 0 : index
    %7 = memref.load %arg2[%c0_3] : memref<2xf32, #tpu.memory_space<smem>>
    %8 = vector.broadcast %7 : f32 to vector<8x1xf32>
    %9 = arith.addf %6, %8 : vector<8x1xf32>
    %10 = vector.extract_strided_slice %1 {offsets = [1, 0], sizes = [1, 32], strides = [1, 1]} : vector<2x32xf32> to vector<1x32xf32>
    %11 = vector.broadcast %10 : vector<1x32xf32> to vector<8x32xf32>
    %12 = arith.mulf %0, %11 : vector<8x32xf32>
    %cst_4 = arith.constant dense<0.000000e+00> : vector<8xf32>
    %13 = vector.multi_reduction <add>, %12, %cst_4 [1] : vector<8x32xf32> to vector<8xf32>
    %14 = vector.shape_cast %13 : vector<8xf32> to vector<8x1xf32>
    %c1 = arith.constant 1 : index
    %15 = memref.load %arg2[%c1] : memref<2xf32, #tpu.memory_space<smem>>
    %16 = vector.broadcast %15 : f32 to vector<8x1xf32>
    %17 = arith.addf %14, %16 : vector<8x1xf32>
    %cst_5 = arith.constant 0.000000e+00 : f32
    %18 = vector.broadcast %cst_5 : f32 to vector<8x1xf32>
    %19 = arith.maximumf %17, %18 : vector<8x1xf32>
    %cst_6 = arith.constant 9.99999997E-7 : f32
    %20 = vector.broadcast %cst_6 : f32 to vector<8x1xf32>
    %21 = arith.addf %19, %20 : vector<8x1xf32>
    %22 = tpu.concatenate %9, %21 in 1 : vector<8x1xf32>, vector<8x1xf32> -> vector<8x2xf32>
    %c0_7 = arith.constant 0 : index
    %c0_8 = arith.constant 0 : index
    %23 = vector.load %arg3[%c0_7, %c0_8] : memref<8x2xf32, #tpu.memory_space<vmem>>, vector<8x2xf32>
    tpu.vector_store %arg3[%c0_7, %c0_8], %22 {strides = array<i32>} : memref<8x2xf32, #tpu.memory_space<vmem>>, vector<8x2xf32>,
    return
  }
}

</mosaic_0001>

<llo_original>
// kernel: survival_classifier.1
$region0: #{survival_classifier.1}
  #allocation0 [shape = 'u32[]', space=smem, size = 0x4, offset = 0x4, fixed_abs, tag = 'smem constant byte address 0x4 - core index']
  #allocation1 [shape = 'u32[72,128]{1,0:T(1,128)}', space=vmem, size = 0x9000, scoped, tag = 'internal scratch']
  %s0 = inlined_call_operand.hbm [shape: f32[8,32], index: 0, kind: input, shape index: {}]
  %s1 = inlined_call_operand.hbm [shape: f32[2,32], index: 1, kind: input, shape index: {}]
  %s2 = inlined_call_operand.vmem [shape: f32[2], index: 2, kind: input, shape index: {}]
  %s3 = inlined_call_operand.vmem [shape: f32[8,2], index: 3, kind: output, shape index: {}]
  %s4 = sld [smem:[#allocation0]]
  $region34: #{survival_classifier.1} parent=0
    _
  %s6 = ssub.s32 1, %s4
  %s7 = scalar_select 0, %s6, %s4
  $region1: #{survival_classifier.1} parent=0
    #allocation2 [shape = 'u8[4096]{0}', space=vmem, size = 0x1000, scoped, tag = 'input window, operand 0, single buffered']
    #allocation3 [shape = 's32[1]{0}', space=sflag, size = 0x4, scoped, tag = 'scoped memory for survival_classifier.1']
    #allocation4 [shape = 's32[1]{0}', space=sflag, size = 0x4, scoped, tag = 'scoped memory for survival_classifier.1']
    #allocation5 [shape = 'u8[1024]{0}', space=vmem, size = 0x400, scoped, tag = 'input window, operand 1, single buffered']
    #allocation6 [shape = 's32[1]{0}', space=sflag, size = 0x4, scoped, tag = 'scoped memory for survival_classifier.1']
    #allocation7 [shape = 'u8[512]{0}', space=smem, size = 0x200, scoped, tag = 'input window, operand 2, single buffered']
    %8 = vsyncpa [#allocation3], 0
    %9 = vsyncpa [#allocation6], 0
    %10 = vsyncpa [#allocation4], 0
    // Predicated region
    $region2: #{survival_classifier.1} parent=1 // pred_check
      _
    $region3: #{survival_classifier.1} parent=1 // pred_check_branch
      %12 = sbr.rel (0) target = $region5
    $region4: #{survival_classifier.1} parent=1 // pred_region
      %14 = vsyncadd [#allocation3], 0
      %s16 = sshll.u32 %s0, 4
      %s17 = int_to_ptr.hbm [resolvable:$true] %s16
      %s18 = sshll.u32 [#allocation2], 4
      %s19 = int_to_ptr.vmem [resolvable:$true] %s18
      %21 = dma.hbm_to_vmem [thread:$0]  %s17, 128, %s19, [#allocation3]
    $region5: #{survival_classifier.1} parent=1 // pred_fallthru
      _
    // Predicated region
    $region6: #{survival_classifier.1} parent=1 // pred_check
      _
    $region7: #{survival_classifier.1} parent=1 // pred_check_branch
      %23 = sbr.rel (0) target = $region9
    $region8: #{survival_classifier.1} parent=1 // pred_region
      %25 = vsyncadd [#allocation6], 0
      %s27 = sshll.u32 %s1, 4
      %s28 = int_to_ptr.hbm [resolvable:$true] %s27
      %s29 = sshll.u32 [#allocation5], 4
      %s30 = int_to_ptr.vmem [resolvable:$true] %s29
      %32 = dma.hbm_to_vmem [thread:$0]  %s28, 32, %s30, [#allocation6]
    $region9: #{survival_classifier.1} parent=1 // pred_fallthru
      _
    // Predicated region
    $region10: #{survival_classifier.1} parent=1 // pred_check
      _
    $region11: #{survival_classifier.1} parent=1 // pred_check_branch
      %34 = sbr.rel (0) target = $region13
    $region12: #{survival_classifier.1} parent=1 // pred_region
      %36 = vsyncadd [#allocation4], 0
      %s38 = sshll.u32 %s2, 4
      %s39 = int_to_ptr.vmem [resolvable:$true] %s38
      %41 = dma.vmem_to_smem %s39, 16, [#allocation7], [#allocation4]
    $region13: #{survival_classifier.1} parent=1 // pred_fallthru
      _
    // Predicated region
    $region14: #{survival_classifier.1} parent=1 // pred_check
      _
    $region15: #{survival_classifier.1} parent=1 // pred_check_branch
      %43 = sbr.rel (0) target = $region17
    $region16: #{survival_classifier.1} parent=1 // pred_region
      %45 = dma.done [#allocation3], 128
    $region17: #{survival_classifier.1} parent=1 // pred_fallthru
      _
    // Predicated region
    $region18: #{survival_classifier.1} parent=1 // pred_check
      _
    $region19: #{survival_classifier.1} parent=1 // pred_check_branch
      %47 = sbr.rel (0) target = $region21
    $region20: #{survival_classifier.1} parent=1 // pred_region
      %49 = dma.done [#allocation6], 32
    $region21: #{survival_classifier.1} parent=1 // pred_fallthru
      _
    // Predicated region
    $region22: #{survival_classifier.1} parent=1 // pred_check
      _
    $region23: #{survival_classifier.1} parent=1 // pred_check_branch
      %51 = sbr.rel (0) target = $region25
    $region24: #{survival_classifier.1} parent=1 // pred_region
      %53 = dma.done [#allocation4], 16
    $region25: #{survival_classifier.1} parent=1 // pred_fallthru
      _
    %54 = sfence
    %v55 = vld [vmem:[#allocation2] sm:$0xff]
    %v56 = vld [vmem:[#allocation5] sm:$0x3]
    %v57 = vperm.slane %v56, 0
    %v58 = vmul.f32 %v55, %v57
    %vm59 = vcmask 261120
    %v60 = vsel %vm59, %v58, 0.0
    %61 = vadd.xlane.f32.xlu0 %v60
    %v62 = vpop.xlane.xlu0 %61
    %s63 = sld [smem:[#allocation7]]
    %v64 = vstv %s63
    %v65 = vadd.f32 %v62, %v64
    %v66 = vperm.slane %v56, 1
    %v67 = vmul.f32 %v55, %v66
    %v68 = vsel %vm59, %v67, 0.0
    %69 = vadd.xlane.f32.xlu0 %v68
    %v70 = vpop.xlane.xlu0 %69
    %s71 = sld [smem:[#allocation7 + $0x1]]
    %v72 = vstv %s71
    %v73 = vadd.f32 %v70, %v72
    %v74 = vmax.f32 %v73, 0.0
    %v75 = vadd.f32 %v74, 1e-06
    %vm76 = vcmask 7168
    %v77 = vsel %vm76, %v65, %v75
    %vm78 = vcmask 15360
    %79 = vst.msk [vmem:[%s3] sm:$0xff] %vm78, %v77
    // Predicated region
    $region26: #{survival_classifier.1} parent=1 // pred_check
      _
    $region27: #{survival_classifier.1} parent=1 // pred_check_branch
      %81 = sbr.rel (0) target = $region29
    $region28: #{survival_classifier.1} parent=1 // pred_region
      _
    $region29: #{survival_classifier.1} parent=1 // pred_fallthru
      _
    // Predicated region
    $region30: #{survival_classifier.1} parent=1 // pred_check
      _
    $region31: #{survival_classifier.1} parent=1 // pred_check_branch
      %83 = sbr.rel (0) target = $region33
    $region32: #{survival_classifier.1} parent=1 // pred_region
      _
    $region33: #{survival_classifier.1} parent=1 // pred_fallthru
      _
    %84 = vsyncpa [#allocation3], 1
    %85 = vsyncpa [#allocation6], 1
    %86 = vsyncpa [#allocation4], 1

</llo_original>
